<compile_context>
chip_gen: v5e
topology: v5e:2x2
jax: 0.10.0
libtpu: 0.0.40
codegen_flags: <defaults>
</compile_context>

<pallas_src>
import jax
import jax.numpy as jnp
from jax import lax
from jax.experimental import pallas as pl
from jax.experimental.pallas import tpu as pltpu

S = 4        # FSResNet1DConfig.stream_num
B = 2        # batch
C_IN = 4     # per-stream input channels (small stand-in for in_channel=[64]*4)
H = 32       # inplane / per-branch output channels (small stand-in for 64)
L = 16       # temporal length
K = 3        # conv kernel size (pad=1, stride=1)

SC = S * C_IN    # 16  : all streams' input channels, stream-major
SH = S * H       # 128 : all streams' hidden channels, stream-major


def _taps_bf16(h2d):
    """h2d: (B*L, C) f32, rows ordered batch-major in time.

    Returns the k=3 / pad=1 im2col patch (B*L, 3*C) in bf16 with column blocks
    [x[t-1] | x[t] | x[t+1]].  Temporal shifts are sublane rolls (XLU slot);
    rows that would cross a batch boundary (t == 0 / t == L-1) are zero-masked,
    which simultaneously realizes the Conv1d zero padding.
    """
    n = h2d.shape[0]
    t = lax.broadcasted_iota(jnp.int32, h2d.shape, 0) % L
    left = pltpu.roll(h2d, shift=1, axis=0)          # row r <- row r-1
    left = jnp.where(t > 0, left, jnp.zeros_like(left))
    right = pltpu.roll(h2d, shift=n - 1, axis=0)     # == shift by -1: row r <- row r+1
    right = jnp.where(t < L - 1, right, jnp.zeros_like(right))
    return jnp.concatenate([left, h2d, right], axis=-1).astype(jnp.bfloat16)


def _fs_resnet1d_kernel(x_ref, ws_ref, w1_ref, w2_ref, aff_ref, out_ref):
    """All S branches at once on block-diagonalized weights; single invocation."""
    x = x_ref[...]          # (B*L, S*C_IN)      f32
    ws = ws_ref[...]        # (K*S*C_IN, S*H)    bf16  block-diag fused stem conv
    w1 = w1_ref[...]        # (K*S*H,   S*H)     bf16  block-diag fused block conv1
    w2 = w2_ref[...]        # (K*S*H,   S*H)     bf16  block-diag fused block conv2
    aff = aff_ref[...]      # (6, S*H)           f32   [g0, b0, g1, b1, g2, b2]

    # ---- stem: conv -> folded BN affine -> relu ------------------------------
    h0 = jnp.dot(_taps_bf16(x), ws, preferred_element_type=jnp.float32)   # (B*L, S*H)
    h0 = jnp.maximum(h0 * aff[0:1, :] + aff[1:2, :], 0.0)

    # ---- basic block, conv1 -> BN -> relu ------------------------------------
    h1 = jnp.dot(_taps_bf16(h0), w1, preferred_element_type=jnp.float32)
    h1 = jnp.maximum(h1 * aff[2:3, :] + aff[3:4, :], 0.0)

    # ---- basic block, conv2 -> BN -> +residual -> relu -----------------------
    h2 = jnp.dot(_taps_bf16(h1), w2, preferred_element_type=jnp.float32)
    h2 = h2 * aff[4:5, :] + aff[5:6, :]
    y = jnp.maximum(h2 + h0, 0.0)                                          # (B*L, S*H)

    # ---- temporal mean (== torch.mean(feature, dim=-1) in NCL layout) --------
    # Output columns are already the per-stream features concatenated along the
    # channel axis, so (B, S*H) is exactly torch.cat([...], dim=-1).
    out_ref[...] = jnp.mean(y.reshape(B, L, SH), axis=1)                   # (B, 128)


def _block_diag_fused(w):
    """w: (S, K, Cin, Cout) per-stream conv taps -> (K*S*Cin, S*Cout) bf16.

    Rows are ordered tap-major (k=0 block, k=1 block, k=2 block), matching the
    [x[t-1] | x[t] | x[t+1]] column order of the im2col patch; within a tap the
    (S*Cin, S*Cout) matrix is block-diagonal over streams.
    """
    s_, k_, ci, co = w.shape
    bd = jnp.zeros((k_, s_ * ci, s_ * co), jnp.float32)
    for s in range(s_):
        bd = bd.at[:, s * ci:(s + 1) * ci, s * co:(s + 1) * co].set(w[s])
    return bd.reshape(k_ * s_ * ci, s_ * co).astype(jnp.bfloat16)


def fs_resnet1d_forward(batch_data_ncl, w_stem, w1, w2, gammas, betas):
    """batch_data_ncl: (S, B, C_in, L) f32 -- the list of per-stream NCL inputs.

    Returns (B, S*H) == torch.cat([mean(branch_s(x_s), dim=-1) for s], dim=-1).
    """
    # channels-last, all streams concatenated along channels (stream-major),
    # then flattened to (B*L, S*C_IN) rows ordered batch-major in time.
    x = jnp.transpose(batch_data_ncl, (1, 3, 0, 2)).reshape(B * L, SC)

    ws_bd = _block_diag_fused(w_stem)      # (48,  128) bf16
    w1_bd = _block_diag_fused(w1)          # (384, 128) bf16
    w2_bd = _block_diag_fused(w2)          # (384, 128) bf16
    aff = jnp.stack([gammas[:, 0].reshape(SH), betas[:, 0].reshape(SH),
                     gammas[:, 1].reshape(SH), betas[:, 1].reshape(SH),
                     gammas[:, 2].reshape(SH), betas[:, 2].reshape(SH)],
                    axis=0).astype(jnp.float32)                      # (6, 128)

    flops = 2 * S * B * L * K * (C_IN * H + 2 * H * H)
    bytes_accessed = (x.size * 4 + ws_bd.size * 2 + w1_bd.size * 2
                      + w2_bd.size * 2 + aff.size * 4 + B * SH * 4)

    # Single kernel invocation: no grid, every operand is a full-array VMEM block.
    return pl.pallas_call(
        _fs_resnet1d_kernel,
        out_shape=jax.ShapeDtypeStruct((B, SH), jnp.float32),
        cost_estimate=pl.CostEstimate(flops=flops, transcendentals=0,
                                      bytes_accessed=bytes_accessed),
    )(x, ws_bd, w1_bd, w2_bd, aff)


def _reference_forward(batch_data_ncl, w_stem, w1, w2, gammas, betas):
    """Pure-JAX f32 reference of the same per-stream branch math."""
    hp = lax.Precision.HIGHEST

    def conv(xp, w):  # xp: (B, L+2, C), w: (K, C, H)
        return sum(jnp.einsum('blc,ch->blh', xp[:, k:k + L, :], w[k], precision=hp)
                   for k in range(K))

    outs = []
    for s in range(S):
        xs = jnp.transpose(batch_data_ncl[s], (0, 2, 1))             # (B, L, C_in)
        xp = jnp.pad(xs, ((0, 0), (1, 1), (0, 0)))
        h0 = jnp.maximum(conv(xp, w_stem[s]) * gammas[s, 0] + betas[s, 0], 0.0)
        h0p = jnp.pad(h0, ((0, 0), (1, 1), (0, 0)))
        h1 = jnp.maximum(conv(h0p, w1[s]) * gammas[s, 1] + betas[s, 1], 0.0)
        h1p = jnp.pad(h1, ((0, 0), (1, 1), (0, 0)))
        h2 = conv(h1p, w2[s]) * gammas[s, 2] + betas[s, 2]
        y = jnp.maximum(h2 + h0, 0.0)                                # (B, L, H)
        outs.append(jnp.mean(y, axis=1))                             # (B, H)
    return jnp.concatenate(outs, axis=-1)                            # (B, S*H)


if __name__ == "__main__":
    key = jax.random.PRNGKey(0)
    k_x, k_ws, k_w1, k_w2, k_g, k_b = jax.random.split(key, 6)

    # batch_data in PyTorch: a list of S tensors, each (B, C_in, L)  (NCL).
    batch_data_ncl = jax.random.normal(k_x, (S, B, C_IN, L), jnp.float32)

    # deterministic synthetic parameters (one ResNet1D branch per stream)
    w_stem = jax.random.normal(k_ws, (S, K, C_IN, H), jnp.float32) / jnp.sqrt(C_IN * K)
    w1 = jax.random.normal(k_w1, (S, K, H, H), jnp.float32) / jnp.sqrt(H * K)
    w2 = jax.random.normal(k_w2, (S, K, H, H), jnp.float32) / jnp.sqrt(H * K)
    gammas = 1.0 + 0.1 * jax.random.normal(k_g, (S, 3, H), jnp.float32)
    betas = 0.1 * jax.random.normal(k_b, (S, 3, H), jnp.float32)

    out = jax.block_until_ready(
        fs_resnet1d_forward(batch_data_ncl, w_stem, w1, w2, gammas, betas))
    assert out.shape == (B, S * H), out.shape

    ref = jax.block_until_ready(
        _reference_forward(batch_data_ncl, w_stem, w1, w2, gammas, betas))
    # 3e-2 tolerance accommodates bf16 MXU operands vs the pure-f32 reference.
    assert jnp.allclose(out, ref, rtol=3e-2, atol=3e-2), \
        float(jnp.max(jnp.abs(out - ref)))

    print("KERNEL_OK")
</pallas_src>

<mosaic_0001>
module attributes {stable_mosaic.version = 11 : i64} {
  func.func @_fs_resnet1d_kernel(%arg0: memref<32x16xf32, #tpu.memory_space<vmem>>, %arg1: memref<48x128xbf16, #tpu.memory_space<vmem>>, %arg2: memref<384x128xbf16, #tpu.memory_space<vmem>>, %arg3: memref<384x128xbf16, #tpu.memory_space<vmem>>, %arg4: memref<6x128xf32, #tpu.memory_space<vmem>>, %arg5: memref<2x128xf32, #tpu.memory_space<vmem>>) attributes {dimension_semantics = [], scalar_prefetch = 0 : i64, scratch_operands = 0 : i64, tpu.core_type = #tpu.core_type<tc>} {
    %c0 = arith.constant 0 : index
    %c0_0 = arith.constant 0 : index
    %0 = vector.load %arg0[%c0, %c0_0] : memref<32x16xf32, #tpu.memory_space<vmem>>, vector<32x16xf32>
    %c0_1 = arith.constant 0 : index
    %c0_2 = arith.constant 0 : index
    %1 = vector.load %arg1[%c0_1, %c0_2] : memref<48x128xbf16, #tpu.memory_space<vmem>>, vector<48x128xbf16>
    %c0_3 = arith.constant 0 : index
    %c0_4 = arith.constant 0 : index
    %2 = vector.load %arg2[%c0_3, %c0_4] : memref<384x128xbf16, #tpu.memory_space<vmem>>, vector<384x128xbf16>
    %c0_5 = arith.constant 0 : index
    %c0_6 = arith.constant 0 : index
    %3 = vector.load %arg3[%c0_5, %c0_6] : memref<384x128xbf16, #tpu.memory_space<vmem>>, vector<384x128xbf16>
    %c0_7 = arith.constant 0 : index
    %c0_8 = arith.constant 0 : index
    %4 = vector.load %arg4[%c0_7, %c0_8] : memref<6x128xf32, #tpu.memory_space<vmem>>, vector<6x128xf32>
    %5 = tpu.iota {dimensions = array<i32: 0>} : vector<32x16xi32>
    %c16_i32 = arith.constant 16 : i32
    %c0_i32 = arith.constant 0 : i32
    %6 = arith.cmpi eq, %c16_i32, %c0_i32 : i32
    %c1_i32 = arith.constant 1 : i32
    %7 = arith.select %6, %c1_i32, %c16_i32 : i32
    %8 = vector.broadcast %7 : i32 to vector<32x16xi32>
    %9 = arith.remsi %5, %8 : vector<32x16xi32>
    %c0_i32_9 = arith.constant 0 : i32
    %10 = vector.broadcast %c0_i32_9 : i32 to vector<32x16xi32>
    %11 = arith.cmpi ne, %9, %10 : vector<32x16xi32>
    %c0_i32_10 = arith.constant 0 : i32
    %12 = vector.broadcast %c0_i32_10 : i32 to vector<32x16xi32>
    %13 = arith.cmpi slt, %9, %12 : vector<32x16xi32>
    %c0_i32_11 = arith.constant 0 : i32
    %14 = arith.cmpi slt, %7, %c0_i32_11 : i32
    %15 = vector.broadcast %14 : i1 to vector<32x16xi1>
    %16 = vector.broadcast %15 : vector<32x16xi1> to vector<32x16xi1>
    %17 = arith.xori %13, %16 : vector<32x16xi1>
    %18 = arith.andi %17, %11 : vector<32x16xi1>
    %19 = vector.broadcast %7 : i32 to vector<32x16xi32>
    %20 = arith.addi %9, %19 : vector<32x16xi32>
    %21 = arith.select %18, %20, %9 : vector<32x16xi1>, vector<32x16xi32>
    %c1_i32_12 = arith.constant 1 : i32
    %22 = tpu.dynamic_rotate %0 by %c1_i32_12 dim 0 : vector<32x16xf32>, i32 -> vector<32x16xf32>
    %c0_i32_13 = arith.constant 0 : i32
    %23 = vector.broadcast %c0_i32_13 : i32 to vector<32x16xi32>
    %24 = arith.cmpi sgt, %21, %23 : vector<32x16xi32>
    %cst = arith.constant 0.000000e+00 : f32
    %25 = vector.broadcast %cst : f32 to vector<32x16xf32>
    %26 = arith.select %24, %22, %25 : vector<32x16xi1>, vector<32x16xf32>
    %c31_i32 = arith.constant 31 : i32
    %27 = tpu.dynamic_rotate %0 by %c31_i32 dim 0 : vector<32x16xf32>, i32 -> vector<32x16xf32>
    %c15_i32 = arith.constant 15 : i32
    %28 = vector.broadcast %c15_i32 : i32 to vector<32x16xi32>
    %29 = arith.cmpi slt, %21, %28 : vector<32x16xi32>
    %cst_14 = arith.constant 0.000000e+00 : f32
    %30 = vector.broadcast %cst_14 : f32 to vector<32x16xf32>
    %31 = arith.select %29, %27, %30 : vector<32x16xi1>, vector<32x16xf32>
    %32 = tpu.concatenate %26, %0, %31 in 1 : vector<32x16xf32>, vector<32x16xf32>, vector<32x16xf32> -> vector<32x48xf32>
    %33 = arith.truncf %32 : vector<32x48xf32> to vector<32x48xbf16>
    %cst_15 = arith.constant dense<0.000000e+00> : vector<32x128xf32>
    %34 = tpu.matmul %33, %1, %cst_15 {dimension_numbers = #tpu.dot_dimension_numbers<[1], [0], [0], [1], [0, 0, 1, 1], [], []>} : vector<32x48xbf16>, vector<48x128xbf16>, vector<32x128xf32> -> vector<32x128xf32>
    %35 = vector.extract_strided_slice %4 {offsets = [0, 0], sizes = [1, 128], strides = [1, 1]} : vector<6x128xf32> to vector<1x128xf32>
    %36 = vector.broadcast %35 : vector<1x128xf32> to vector<32x128xf32>
    %37 = arith.mulf %34, %36 : vector<32x128xf32>
    %38 = vector.extract_strided_slice %4 {offsets = [1, 0], sizes = [1, 128], strides = [1, 1]} : vector<6x128xf32> to vector<1x128xf32>
    %39 = vector.broadcast %38 : vector<1x128xf32> to vector<32x128xf32>
    %40 = arith.addf %37, %39 : vector<32x128xf32>
    %cst_16 = arith.constant 0.000000e+00 : f32
    %41 = vector.broadcast %cst_16 : f32 to vector<32x128xf32>
    %42 = arith.maximumf %40, %41 : vector<32x128xf32>
    %43 = tpu.iota {dimensions = array<i32: 0>} : vector<32x128xi32>
    %c16_i32_17 = arith.constant 16 : i32
    %c0_i32_18 = arith.constant 0 : i32
    %44 = arith.cmpi eq, %c16_i32_17, %c0_i32_18 : i32
    %c1_i32_19 = arith.constant 1 : i32
    %45 = arith.select %44, %c1_i32_19, %c16_i32_17 : i32
    %46 = vector.broadcast %45 : i32 to vector<32x128xi32>
    %47 = arith.remsi %43, %46 : vector<32x128xi32>
    %c0_i32_20 = arith.constant 0 : i32
    %48 = vector.broadcast %c0_i32_20 : i32 to vector<32x128xi32>
    %49 = arith.cmpi ne, %47, %48 : vector<32x128xi32>
    %c0_i32_21 = arith.constant 0 : i32
    %50 = vector.broadcast %c0_i32_21 : i32 to vector<32x128xi32>
    %51 = arith.cmpi slt, %47, %50 : vector<32x128xi32>
    %c0_i32_22 = arith.constant 0 : i32
    %52 = arith.cmpi slt, %45, %c0_i32_22 : i32
    %53 = vector.broadcast %52 : i1 to vector<32x128xi1>
    %54 = vector.broadcast %53 : vector<32x128xi1> to vector<32x128xi1>
    %55 = arith.xori %51, %54 : vector<32x128xi1>
    %56 = arith.andi %55, %49 : vector<32x128xi1>
    %57 = vector.broadcast %45 : i32 to vector<32x128xi32>
    %58 = arith.addi %47, %57 : vector<32x128xi32>
    %59 = arith.select %56, %58, %47 : vector<32x128xi1>, vector<32x128xi32>
    %c1_i32_23 = arith.constant 1 : i32
    %60 = tpu.dynamic_rotate %42 by %c1_i32_23 dim 0 : vector<32x128xf32>, i32 -> vector<32x128xf32>
    %c0_i32_24 = arith.constant 0 : i32
    %61 = vector.broadcast %c0_i32_24 : i32 to vector<32x128xi32>
    %62 = arith.cmpi sgt, %59, %61 : vector<32x128xi32>
    %cst_25 = arith.constant 0.000000e+00 : f32
    %63 = vector.broadcast %cst_25 : f32 to vector<32x128xf32>
    %64 = arith.select %62, %60, %63 : vector<32x128xi1>, vector<32x128xf32>
    %c31_i32_26 = arith.constant 31 : i32
    %65 = tpu.dynamic_rotate %42 by %c31_i32_26 dim 0 : vector<32x128xf32>, i32 -> vector<32x128xf32>
    %c15_i32_27 = arith.constant 15 : i32
    %66 = vector.broadcast %c15_i32_27 : i32 to vector<32x128xi32>
    %67 = arith.cmpi slt, %59, %66 : vector<32x128xi32>
    %cst_28 = arith.constant 0.000000e+00 : f32
    %68 = vector.broadcast %cst_28 : f32 to vector<32x128xf32>
    %69 = arith.select %67, %65, %68 : vector<32x128xi1>, vector<32x128xf32>
    %70 = tpu.concatenate %64, %42, %69 in 1 : vector<32x128xf32>, vector<32x128xf32>, vector<32x128xf32> -> vector<32x384xf32>
    %71 = arith.truncf %70 : vector<32x384xf32> to vector<32x384xbf16>
    %cst_29 = arith.constant dense<0.000000e+00> : vector<32x128xf32>
    %72 = tpu.matmul %71, %2, %cst_29 {dimension_numbers = #tpu.dot_dimension_numbers<[1], [0], [0], [1], [0, 0, 1, 1], [], []>} : vector<32x384xbf16>, vector<384x128xbf16>, vector<32x128xf32> -> vector<32x128xf32>
    %73 = vector.extract_strided_slice %4 {offsets = [2, 0], sizes = [1, 128], strides = [1, 1]} : vector<6x128xf32> to vector<1x128xf32>
    %74 = vector.broadcast %73 : vector<1x128xf32> to vector<32x128xf32>
    %75 = arith.mulf %72, %74 : vector<32x128xf32>
    %76 = vector.extract_strided_slice %4 {offsets = [3, 0], sizes = [1, 128], strides = [1, 1]} : vector<6x128xf32> to vector<1x128xf32>
    %77 = vector.broadcast %76 : vector<1x128xf32> to vector<32x128xf32>
    %78 = arith.addf %75, %77 : vector<32x128xf32>
    %cst_30 = arith.constant 0.000000e+00 : f32
    %79 = vector.broadcast %cst_30 : f32 to vector<32x128xf32>
    %80 = arith.maximumf %78, %79 : vector<32x128xf32>
    %81 = tpu.iota {dimensions = array<i32: 0>} : vector<32x128xi32>
    %c16_i32_31 = arith.constant 16 : i32
    %c0_i32_32 = arith.constant 0 : i32
    %82 = arith.cmpi eq, %c16_i32_31, %c0_i32_32 : i32
    %c1_i32_33 = arith.constant 1 : i32
    %83 = arith.select %82, %c1_i32_33, %c16_i32_31 : i32
    %84 = vector.broadcast %83 : i32 to vector<32x128xi32>
    %85 = arith.remsi %81, %84 : vector<32x128xi32>
    %c0_i32_34 = arith.constant 0 : i32
    %86 = vector.broadcast %c0_i32_34 : i32 to vector<32x128xi32>
    %87 = arith.cmpi ne, %85, %86 : vector<32x128xi32>
    %c0_i32_35 = arith.constant 0 : i32
    %88 = vector.broadcast %c0_i32_35 : i32 to vector<32x128xi32>
    %89 = arith.cmpi slt, %85, %88 : vector<32x128xi32>
    %c0_i32_36 = arith.constant 0 : i32
    %90 = arith.cmpi slt, %83, %c0_i32_36 : i32
    %91 = vector.broadcast %90 : i1 to vector<32x128xi1>
    %92 = vector.broadcast %91 : vector<32x128xi1> to vector<32x128xi1>
    %93 = arith.xori %89, %92 : vector<32x128xi1>
    %94 = arith.andi %93, %87 : vector<32x128xi1>
    %95 = vector.broadcast %83 : i32 to vector<32x128xi32>
    %96 = arith.addi %85, %95 : vector<32x128xi32>
    %97 = arith.select %94, %96, %85 : vector<32x128xi1>, vector<32x128xi32>
    %c1_i32_37 = arith.constant 1 : i32
    %98 = tpu.dynamic_rotate %80 by %c1_i32_37 dim 0 : vector<32x128xf32>, i32 -> vector<32x128xf32>
    %c0_i32_38 = arith.constant 0 : i32
    %99 = vector.broadcast %c0_i32_38 : i32 to vector<32x128xi32>
    %100 = arith.cmpi sgt, %97, %99 : vector<32x128xi32>
    %cst_39 = arith.constant 0.000000e+00 : f32
    %101 = vector.broadcast %cst_39 : f32 to vector<32x128xf32>
    %102 = arith.select %100, %98, %101 : vector<32x128xi1>, vector<32x128xf32>
    %c31_i32_40 = arith.constant 31 : i32
    %103 = tpu.dynamic_rotate %80 by %c31_i32_40 dim 0 : vector<32x128xf32>, i32 -> vector<32x128xf32>
    %c15_i32_41 = arith.constant 15 : i32
    %104 = vector.broadcast %c15_i32_41 : i32 to vector<32x128xi32>
    %105 = arith.cmpi slt, %97, %104 : vector<32x128xi32>
    %cst_42 = arith.constant 0.000000e+00 : f32
    %106 = vector.broadcast %cst_42 : f32 to vector<32x128xf32>
    %107 = arith.select %105, %103, %106 : vector<32x128xi1>, vector<32x128xf32>
    %108 = tpu.concatenate %102, %80, %107 in 1 : vector<32x128xf32>, vector<32x128xf32>, vector<32x128xf32> -> vector<32x384xf32>
    %109 = arith.truncf %108 : vector<32x384xf32> to vector<32x384xbf16>
    %cst_43 = arith.constant dense<0.000000e+00> : vector<32x128xf32>
    %110 = tpu.matmul %109, %3, %cst_43 {dimension_numbers = #tpu.dot_dimension_numbers<[1], [0], [0], [1], [0, 0, 1, 1], [], []>} : vector<32x384xbf16>, vector<384x128xbf16>, vector<32x128xf32> -> vector<32x128xf32>
    %111 = vector.extract_strided_slice %4 {offsets = [4, 0], sizes = [1, 128], strides = [1, 1]} : vector<6x128xf32> to vector<1x128xf32>
    %112 = vector.broadcast %111 : vector<1x128xf32> to vector<32x128xf32>
    %113 = arith.mulf %110, %112 : vector<32x128xf32>
    %114 = vector.extract_strided_slice %4 {offsets = [5, 0], sizes = [1, 128], strides = [1, 1]} : vector<6x128xf32> to vector<1x128xf32>
    %115 = vector.broadcast %114 : vector<1x128xf32> to vector<32x128xf32>
    %116 = arith.addf %113, %115 : vector<32x128xf32>
    %117 = arith.addf %116, %42 : vector<32x128xf32>
    %cst_44 = arith.constant 0.000000e+00 : f32
    %118 = vector.broadcast %cst_44 : f32 to vector<32x128xf32>
    %119 = arith.maximumf %117, %118 : vector<32x128xf32>
    %120 = vector.shape_cast %119 : vector<32x128xf32> to vector<2x16x128xf32>
    %cst_45 = arith.constant dense<0.000000e+00> : vector<2x128xf32>
    %121 = vector.multi_reduction <add>, %120, %cst_45 [1] : vector<2x16x128xf32> to vector<2x128xf32>
    %cst_46 = arith.constant 1.600000e+01 : f32
    %122 = vector.broadcast %cst_46 : f32 to vector<2x128xf32>
    %123 = arith.divf %121, %122 : vector<2x128xf32>
    %c0_47 = arith.constant 0 : index
    %c0_48 = arith.constant 0 : index
    %124 = vector.load %arg5[%c0_47, %c0_48] : memref<2x128xf32, #tpu.memory_space<vmem>>, vector<2x128xf32>
    tpu.vector_store %arg5[%c0_47, %c0_48], %123 {strides = array<i32>} : memref<2x128xf32, #tpu.memory_space<vmem>>, vector<2x128xf32>,
    return
  }
}

</mosaic_0001>

<llo_original>
// kernel: tpu_custom_call.1
$region0: #{tpu_custom_call.1}
  #allocation0 [shape = 'u32[]', space=smem, size = 0x4, offset = 0x4, fixed_abs, tag = 'smem constant byte address 0x4 - core index']
  #allocation1 [shape = 'u32[72,128]{1,0:T(1,128)}', space=vmem, size = 0x9000, scoped, tag = 'internal scratch']
  %s0 = inlined_call_operand.vmem [shape: f32[32,16], index: 0, kind: input, shape index: {}]
  %s1 = inlined_call_operand.vmem [shape: bf16[48,128], index: 1, kind: input, shape index: {}]
  %s2 = inlined_call_operand.hbm [shape: bf16[384,128], index: 2, kind: input, shape index: {}]
  %s3 = inlined_call_operand.hbm [shape: bf16[384,128], index: 3, kind: input, shape index: {}]
  %s4 = inlined_call_operand.vmem [shape: f32[6,128], index: 4, kind: input, shape index: {}]
  %s5 = inlined_call_operand.hbm [shape: f32[2,128], index: 5, kind: output, shape index: {}]
  %s6 = sld [smem:[#allocation0]]
  $region38: #{tpu_custom_call.1} parent=0
    _
  %s8 = ssub.s32 1, %s6
  %s9 = scalar_select 0, %s8, %s6
  $region1: #{tpu_custom_call.1} parent=0
    #allocation2 [shape = 'u8[98304]{0}', space=vmem, size = 0x18000, scoped, tag = 'input window, operand 2, single buffered']
    #allocation3 [shape = 's32[1]{0}', space=sflag, size = 0x4, scoped, tag = 'scoped memory for tpu_custom_call.1']
    #allocation4 [shape = 's32[1]{0}', space=sflag, size = 0x4, scoped, tag = 'scoped memory for tpu_custom_call.1']
    #allocation5 [shape = 'u8[98304]{0}', space=vmem, size = 0x18000, scoped, tag = 'input window, operand 3, single buffered']
    #allocation6 [shape = 's32[1]{0}', space=sflag, size = 0x4, scoped, tag = 'scoped memory for tpu_custom_call.1']
    #allocation7 [shape = 'u8[1024]{0}', space=vmem, size = 0x400, scoped, tag = 'output window, operand 0, single buffered']
    %10 = vsyncpa [#allocation3], 0
    %11 = vsyncpa [#allocation6], 0
    %12 = vsyncpa [#allocation4], 0
    // Predicated region
    $region2: #{tpu_custom_call.1} parent=1 // pred_check
      _
    $region3: #{tpu_custom_call.1} parent=1 // pred_check_branch
      %14 = sbr.rel (0) target = $region5
    $region4: #{tpu_custom_call.1} parent=1 // pred_region
      _
    $region5: #{tpu_custom_call.1} parent=1 // pred_fallthru
      _
    // Predicated region
    $region6: #{tpu_custom_call.1} parent=1 // pred_check
      _
    $region7: #{tpu_custom_call.1} parent=1 // pred_check_branch
      %16 = sbr.rel (0) target = $region9
    $region8: #{tpu_custom_call.1} parent=1 // pred_region
      _
    $region9: #{tpu_custom_call.1} parent=1 // pred_fallthru
      _
    // Predicated region
    $region10: #{tpu_custom_call.1} parent=1 // pred_check
      _
    $region11: #{tpu_custom_call.1} parent=1 // pred_check_branch
      %18 = sbr.rel (0) target = $region13
    $region12: #{tpu_custom_call.1} parent=1 // pred_region
      %20 = vsyncadd [#allocation3], 0
      %s21 = sshll.u32 %s2, 4
      %s22 = int_to_ptr.hbm [resolvable:$true] %s21
      %s23 = sshll.u32 [#allocation2], 4
      %s24 = int_to_ptr.vmem [resolvable:$true] %s23
      %29 = dma.hbm_to_vmem [thread:$0]  %s22, 3072, %s24, [#allocation3], 64, 64, 4
    $region13: #{tpu_custom_call.1} parent=1 // pred_fallthru
      _
    // Predicated region
    $region14: #{tpu_custom_call.1} parent=1 // pred_check
      _
    $region15: #{tpu_custom_call.1} parent=1 // pred_check_branch
      %31 = sbr.rel (0) target = $region17
    $region16: #{tpu_custom_call.1} parent=1 // pred_region
      %33 = vsyncadd [#allocation6], 0
      %s34 = sshll.u32 %s3, 4
      %s35 = int_to_ptr.hbm [resolvable:$true] %s34
      %s36 = sshll.u32 [#allocation5], 4
      %s37 = int_to_ptr.vmem [resolvable:$true] %s36
      %42 = dma.hbm_to_vmem [thread:$0]  %s35, 3072, %s37, [#allocation6], 64, 64, 4
    $region17: #{tpu_custom_call.1} parent=1 // pred_fallthru
      _
    // Predicated region
    $region18: #{tpu_custom_call.1} parent=1 // pred_check
      _
    $region19: #{tpu_custom_call.1} parent=1 // pred_check_branch
      %44 = sbr.rel (0) target = $region21
    $region20: #{tpu_custom_call.1} parent=1 // pred_region
      _
    $region21: #{tpu_custom_call.1} parent=1 // pred_fallthru
      _
    // Predicated region
    $region22: #{tpu_custom_call.1} parent=1 // pred_check
      _
    $region23: #{tpu_custom_call.1} parent=1 // pred_check_branch
      %46 = sbr.rel (0) target = $region25
    $region24: #{tpu_custom_call.1} parent=1 // pred_region
      %48 = dma.done [#allocation3], 3072
    $region25: #{tpu_custom_call.1} parent=1 // pred_fallthru
      _
    // Predicated region
    $region26: #{tpu_custom_call.1} parent=1 // pred_check
      _
    $region27: #{tpu_custom_call.1} parent=1 // pred_check_branch
      %50 = sbr.rel (0) target = $region29
    $region28: #{tpu_custom_call.1} parent=1 // pred_region
      %52 = dma.done [#allocation6], 3072
    $region29: #{tpu_custom_call.1} parent=1 // pred_fallthru
      _
    %v54 = vld [vmem:[%s0] sm:$0xff]
    %v55 = vld [vmem:[%s0 + $0x8] sm:$0xff]
    %v56 = vld [vmem:[%s0 + $0x10] sm:$0xff]
    %v57 = vld [vmem:[%s0 + $0x18] sm:$0xff]
    %v58 = vld [vmem:[%s1] sm:$0xf]
    %v59 = vld [vmem:[%s1 + $0x4] sm:$0xf]
    %v60 = vld [vmem:[%s1 + $0x8] sm:$0xf]
    %v61 = vld [vmem:[%s1 + $0xc] sm:$0xf]
    %v62 = vld [vmem:[%s1 + $0x10] sm:$0xf]
    %v63 = vld [vmem:[%s1 + $0x14] sm:$0xf]
    %v64 = vld [vmem:[#allocation2] sm:$0xf]
    %v65 = vld [vmem:[#allocation2 + $0x4] sm:$0xf]
    %v66 = vld [vmem:[#allocation2 + $0x8] sm:$0xf]
    %v67 = vld [vmem:[#allocation2 + $0xc] sm:$0xf]
    %v68 = vld [vmem:[#allocation2 + $0x10] sm:$0xf]
    %v69 = vld [vmem:[#allocation2 + $0x14] sm:$0xf]
    %v70 = vld [vmem:[#allocation2 + $0x18] sm:$0xf]
    %v71 = vld [vmem:[#allocation2 + $0x1c] sm:$0xf]
    %v72 = vld [vmem:[#allocation2 + $0x20] sm:$0xf]
    %v73 = vld [vmem:[#allocation2 + $0x24] sm:$0xf]
    %v74 = vld [vmem:[#allocation2 + $0x28] sm:$0xf]
    %v75 = vld [vmem:[#allocation2 + $0x2c] sm:$0xf]
    %v76 = vld [vmem:[#allocation2 + $0x30] sm:$0xf]
    %v77 = vld [vmem:[#allocation2 + $0x34] sm:$0xf]
    %v78 = vld [vmem:[#allocation2 + $0x38] sm:$0xf]
    %v79 = vld [vmem:[#allocation2 + $0x3c] sm:$0xf]
    %v80 = vld [vmem:[#allocation2 + $0x40] sm:$0xf]
    %v81 = vld [vmem:[#allocation2 + $0x44] sm:$0xf]
    %v82 = vld [vmem:[#allocation2 + $0x48] sm:$0xf]
    %v83 = vld [vmem:[#allocation2 + $0x4c] sm:$0xf]
    %v84 = vld [vmem:[#allocation2 + $0x50] sm:$0xf]
    %v85 = vld [vmem:[#allocation2 + $0x54] sm:$0xf]
    %v86 = vld [vmem:[#allocation2 + $0x58] sm:$0xf]
    %v87 = vld [vmem:[#allocation2 + $0x5c] sm:$0xf]
    %v88 = vld [vmem:[#allocation2 + $0x60] sm:$0xf]
    %v89 = vld [vmem:[#allocation2 + $0x64] sm:$0xf]
    %v90 = vld [vmem:[#allocation2 + $0x68] sm:$0xf]
    %v91 = vld [vmem:[#allocation2 + $0x6c] sm:$0xf]
    %v92 = vld [vmem:[#allocation2 + $0x70] sm:$0xf]
    %v93 = vld [vmem:[#allocation2 + $0x74] sm:$0xf]
    %v94 = vld [vmem:[#allocation2 + $0x78] sm:$0xf]
    %v95 = vld [vmem:[#allocation2 + $0x7c] sm:$0xf]
    %v96 = vld [vmem:[#allocation2 + $0x80] sm:$0xf]
    %v97 = vld [vmem:[#allocation2 + $0x84] sm:$0xf]
    %v98 = vld [vmem:[#allocation2 + $0x88] sm:$0xf]
    %v99 = vld [vmem:[#allocation2 + $0x8c] sm:$0xf]
    %v100 = vld [vmem:[#allocation2 + $0x90] sm:$0xf]
    %v101 = vld [vmem:[#allocation2 + $0x94] sm:$0xf]
    %v102 = vld [vmem:[#allocation2 + $0x98] sm:$0xf]
    %v103 = vld [vmem:[#allocation2 + $0x9c] sm:$0xf]
    %v104 = vld [vmem:[#allocation2 + $0xa0] sm:$0xf]
    %v105 = vld [vmem:[#allocation2 + $0xa4] sm:$0xf]
    %v106 = vld [vmem:[#allocation2 + $0xa8] sm:$0xf]
    %v107 = vld [vmem:[#allocation2 + $0xac] sm:$0xf]
    %v108 = vld [vmem:[#allocation2 + $0xb0] sm:$0xf]
    %v109 = vld [vmem:[#allocation2 + $0xb4] sm:$0xf]
    %v110 = vld [vmem:[#allocation2 + $0xb8] sm:$0xf]
    %v111 = vld [vmem:[#allocation2 + $0xbc] sm:$0xf]
    %v112 = vld [vmem:[#allocation5] sm:$0xf]
    %v113 = vld [vmem:[#allocation5 + $0x4] sm:$0xf]
    %v114 = vld [vmem:[#allocation5 + $0x8] sm:$0xf]
    %v115 = vld [vmem:[#allocation5 + $0xc] sm:$0xf]
    %v116 = vld [vmem:[#allocation5 + $0x10] sm:$0xf]
    %v117 = vld [vmem:[#allocation5 + $0x14] sm:$0xf]
    %v118 = vld [vmem:[#allocation5 + $0x18] sm:$0xf]
    %v119 = vld [vmem:[#allocation5 + $0x1c] sm:$0xf]
    %v120 = vld [vmem:[#allocation5 + $0x20] sm:$0xf]
    %v121 = vld [vmem:[#allocation5 + $0x24] sm:$0xf]
    %v122 = vld [vmem:[#allocation5 + $0x28] sm:$0xf]
    %v123 = vld [vmem:[#allocation5 + $0x2c] sm:$0xf]
    %v124 = vld [vmem:[#allocation5 + $0x30] sm:$0xf]
    %v125 = vld [vmem:[#allocation5 + $0x34] sm:$0xf]
    %v126 = vld [vmem:[#allocation5 + $0x38] sm:$0xf]
    %v127 = vld [vmem:[#allocation5 + $0x3c] sm:$0xf]
    %v128 = vld [vmem:[#allocation5 + $0x40] sm:$0xf]
    %v129 = vld [vmem:[#allocation5 + $0x44] sm:$0xf]
    %v130 = vld [vmem:[#allocation5 + $0x48] sm:$0xf]
    %v131 = vld [vmem:[#allocation5 + $0x4c] sm:$0xf]
    %v132 = vld [vmem:[#allocation5 + $0x50] sm:$0xf]
    %v133 = vld [vmem:[#allocation5 + $0x54] sm:$0xf]
    %v134 = vld [vmem:[#allocation5 + $0x58] sm:$0xf]
    %v135 = vld [vmem:[#allocation5 + $0x5c] sm:$0xf]
    %v136 = vld [vmem:[#allocation5 + $0x60] sm:$0xf]
    %v137 = vld [vmem:[#allocation5 + $0x64] sm:$0xf]
    %v138 = vld [vmem:[#allocation5 + $0x68] sm:$0xf]
    %v139 = vld [vmem:[#allocation5 + $0x6c] sm:$0xf]
    %v140 = vld [vmem:[#allocation5 + $0x70] sm:$0xf]
    %v141 = vld [vmem:[#allocation5 + $0x74] sm:$0xf]
    %v142 = vld [vmem:[#allocation5 + $0x78] sm:$0xf]
    %v143 = vld [vmem:[#allocation5 + $0x7c] sm:$0xf]
    %v144 = vld [vmem:[#allocation5 + $0x80] sm:$0xf]
    %v145 = vld [vmem:[#allocation5 + $0x84] sm:$0xf]
    %v146 = vld [vmem:[#allocation5 + $0x88] sm:$0xf]
    %v147 = vld [vmem:[#allocation5 + $0x8c] sm:$0xf]
    %v148 = vld [vmem:[#allocation5 + $0x90] sm:$0xf]
    %v149 = vld [vmem:[#allocation5 + $0x94] sm:$0xf]
    %v150 = vld [vmem:[#allocation5 + $0x98] sm:$0xf]
    %v151 = vld [vmem:[#allocation5 + $0x9c] sm:$0xf]
    %v152 = vld [vmem:[#allocation5 + $0xa0] sm:$0xf]
    %v153 = vld [vmem:[#allocation5 + $0xa4] sm:$0xf]
    %v154 = vld [vmem:[#allocation5 + $0xa8] sm:$0xf]
    %v155 = vld [vmem:[#allocation5 + $0xac] sm:$0xf]
    %v156 = vld [vmem:[#allocation5 + $0xb0] sm:$0xf]
    %v157 = vld [vmem:[#allocation5 + $0xb4] sm:$0xf]
    %v158 = vld [vmem:[#allocation5 + $0xb8] sm:$0xf]
    %v159 = vld [vmem:[#allocation5 + $0xbc] sm:$0xf]
    %v160 = vld [vmem:[%s4] sm:$0x3f]
    %v161 = vlaneseq
    %v162 = vshrl.u32 %v161, 7
    %v163 = vadd.s32 %v162, 8
    %v164 = vadd.s32 %v162, 16
    %v165 = vadd.s32 %v162, 24
    %vm166 = vcmp.lt.s32.totalorder %v162, 0
    %v167 = vsub.s32 0, %v162
    %v168 = vsel %vm166, %v167, %v162
    %v169 = vshrl.u32 %v168, 4
    %v170 = vand.u32 %v168, 15
    %v171 = vsub.s32 0, %v170
    %v172 = vsel %vm166, %v171, %v170
    %vm173 = vcmp.lt.s32.totalorder %v163, 0
    %v174 = vsub.s32 0, %v163
    %v175 = vsel %vm173, %v174, %v163
    %v176 = vshrl.u32 %v175, 4
    %v177 = vand.u32 %v175, 15
    %v178 = vsub.s32 0, %v177
    %v179 = vsel %vm173, %v178, %v177
    %vm180 = vcmp.lt.s32.totalorder %v164, 0
    %v181 = vsub.s32 0, %v164
    %v182 = vsel %vm180, %v181, %v164
    %v183 = vshrl.u32 %v182, 4
    %v184 = vand.u32 %v182, 15
    %v185 = vsub.s32 0, %v184
    %v186 = vsel %vm180, %v185, %v184
    %vm187 = vcmp.lt.s32.totalorder %v165, 0
    %v188 = vsub.s32 0, %v165
    %v189 = vsel %vm187, %v188, %v165
    %v190 = vshrl.u32 %v189, 4
    %v191 = vand.u32 %v189, 15
    %v192 = vsub.s32 0, %v191
    %v193 = vsel %vm187, %v192, %v191
    %vm194 = vcmp.ne.s32.totalorder %v172, 0
    %vm195 = vcmp.ne.s32.totalorder %v179, 0
    %vm196 = vcmp.ne.s32.totalorder %v186, 0
    %vm197 = vcmp.ne.s32.totalorder %v193, 0
    %vm198 = vcmp.lt.s32.totalorder %v172, 0
    %vm199 = vcmp.lt.s32.totalorder %v179, 0
    %vm200 = vcmp.lt.s32.totalorder %v186, 0
    %vm201 = vcmp.lt.s32.totalorder %v193, 0
    %vm202 = vmand %vm198, %vm194
    %vm203 = vmand %vm199, %vm195
    %vm204 = vmand %vm200, %vm196
    %vm205 = vmand %vm201, %vm197
    %v206 = vadd.s32 %v172, 16
    %v207 = vadd.s32 %v179, 16
    %v208 = vadd.s32 %v186, 16
    %v209 = vadd.s32 %v193, 16
    %v210 = vsel %vm202, %v206, %v172
    %v211 = vsel %vm203, %v207, %v179
    %v212 = vsel %vm204, %v208, %v186
    %v213 = vsel %vm205, %v209, %v193
    %v214 = vrot.slane %v54, 7
    %v215 = vrot.slane %v55, 7
    %v216 = vrot.slane %v56, 7
    %v217 = vrot.slane %v57, 7
    %vm218 = vcmp.lt.s32.totalorder %v162, 1
    %v219 = vsel %vm218, %v216, %v217
    %v220 = vsel %vm218, %v215, %v216
    %v221 = vsel %vm218, %v214, %v215
    %v222 = vsel %vm218, %v217, %v214
    %vm223 = vcmp.gt.s32.totalorder %v210, 0
    %vm224 = vcmp.gt.s32.totalorder %v211, 0
    %vm225 = vcmp.gt.s32.totalorder %v212, 0
    %vm226 = vcmp.gt.s32.totalorder %v213, 0
    %v227 = vsel %vm223, %v222, 0.0
    %v228 = vsel %vm224, %v221, 0.0
    %v229 = vsel %vm225, %v220, 0.0
    %v230 = vsel %vm226, %v219, 0.0
    %v231 = vrot.slane %v54, 1
    %v232 = vrot.slane %v55, 1
    %v233 = vrot.slane %v56, 1
    %v234 = vrot.slane %v57, 1
    %vm235 = vcmp.lt.s32.totalorder %v162, 7
    %v236 = vsel %vm235, %v233, %v234
    %v237 = vsel %vm235, %v232, %v233
    %v238 = vsel %vm235, %v231, %v232
    %v239 = vsel %vm235, %v234, %v231
    %vm240 = vcmp.lt.s32.totalorder %v210, 15
    %vm241 = vcmp.lt.s32.totalorder %v211, 15
    %vm242 = vcmp.lt.s32.totalorder %v212, 15
    %vm243 = vcmp.lt.s32.totalorder %v213, 15
    %v244 = vsel %vm240, %v238, 0.0
    %v245 = vsel %vm241, %v237, 0.0
    %v246 = vsel %vm242, %v236, 0.0
    %v247 = vsel %vm243, %v239, 0.0
    %252 = vrot.lane.b32.xlu0 %v54, 16
    %v253 = vpop.permute.xlu0 %252
    %254 = vrot.lane.b32.xlu0 %v55, 16
    %v255 = vpop.permute.xlu0 %254
    %256 = vrot.lane.b32.xlu0 %v56, 16
    %v257 = vpop.permute.xlu0 %256
    %258 = vrot.lane.b32.xlu0 %v57, 16
    %v259 = vpop.permute.xlu0 %258
    %268 = vrot.lane.b32.xlu0 %v244, 32
    %v269 = vpop.permute.xlu0 %268
    %270 = vrot.lane.b32.xlu0 %v245, 32
    %v271 = vpop.permute.xlu0 %270
    %272 = vrot.lane.b32.xlu0 %v246, 32
    %v273 = vpop.permute.xlu0 %272
    %274 = vrot.lane.b32.xlu0 %v247, 32
    %v275 = vpop.permute.xlu0 %274
    %vm280 = vcmask 130048
    %v281 = vsel %vm280, %v227, %v253
    %v282 = vsel %vm280, %v228, %v255
    %v283 = vsel %vm280, %v229, %v257
    %v284 = vsel %vm280, %v230, %v259
    %vm285 = vcmask 261120
    %v286 = vsel %vm285, %v281, %v269
    %v287 = vsel %vm285, %v282, %v271
    %v288 = vsel %vm285, %v283, %v273
    %v289 = vsel %vm285, %v284, %v275
    %v290 = vpack.c.bf16 %v287, %v286
    %v291 = vpack.c.bf16 %v289, %v288
    %v298 = vunpack.c.l.b16 %v58
    %v299 = vunpack.c.l.b16 %v59
    %v300 = vunpack.c.l.b16 %v60
    %v301 = vunpack.c.l.b16 %v61
    %v302 = vunpack.c.l.b16 %v62
    %v303 = vunpack.c.l.b16 %v63
    %v304 = vpack.c.b16 %v299, %v298
    %v305 = vpack.c.b16 %v301, %v300
    %v306 = vpack.c.b16 %v303, %v302
    %vm310 = vcmask 392192
    %v312 = vsel %vm310, %v290, 0
    %v315 = vsel %vm310, %v291, 0
    %317 = vmatpush.bf16.msra.mxu0 0
    %318 = vmatpush.bf16.msra.mxu0 0
    %319 = vmatpush.bf16.msra.mxu0 0
    %320 = vmatpush.bf16.msra.mxu0 0
    %321 = vmatpush.bf16.msra.mxu0 0
    %322 = vmatpush.bf16.msra.mxu0 %v306
    %323 = vmatpush.bf16.msra.mxu0 %v305
    %324 = vmatpush.bf16.msra.mxu0 %v304
    %325 = vmatmul.bf16.gmra.mxu0 %v312
    %v326 = vpop.f32.mrf.mxu0
    %v327 = vadd.f32 0.0, %v326
    %v328 = vpop.f32.mrf.mxu0
    %v329 = vadd.f32 0.0, %v328
    %330 = vmatmul.bf16.gmra.mxu0 %v315
    %v331 = vpop.f32.mrf.mxu0
    %v332 = vadd.f32 0.0, %v331
    %v333 = vpop.f32.mrf.mxu0
    %v334 = vadd.f32 0.0, %v333
    %335 = vdwg.mxu0
    %v336 = vperm.slane %v160, 0
    %v337 = vmul.f32 %v327, %v336
    %v338 = vmul.f32 %v329, %v336
    %v339 = vmul.f32 %v332, %v336
    %v340 = vmul.f32 %v334, %v336
    %v341 = vperm.slane %v160, 1
    %v342 = vadd.f32 %v337, %v341
    %v343 = vadd.f32 %v338, %v341
    %v344 = vadd.f32 %v339, %v341
    %v345 = vadd.f32 %v340, %v341
    %v346 = vmax.f32 %v342, 0.0
    %v347 = vmax.f32 %v343, 0.0
    %v348 = vmax.f32 %v344, 0.0
    %v349 = vmax.f32 %v345, 0.0
    %v350 = vrot.slane %v346, 7
    %v351 = vrot.slane %v347, 7
    %v352 = vrot.slane %v348, 7
    %v353 = vrot.slane %v349, 7
    %v354 = vsel %vm218, %v352, %v353
    %v355 = vsel %vm218, %v351, %v352
    %v356 = vsel %vm218, %v350, %v351
    %v357 = vsel %vm218, %v353, %v350
    %v358 = vsel %vm223, %v357, 0.0
    %v359 = vsel %vm224, %v356, 0.0
    %v360 = vsel %vm225, %v355, 0.0
    %v361 = vsel %vm226, %v354, 0.0
    %v362 = vrot.slane %v346, 1
    %v363 = vrot.slane %v347, 1
    %v364 = vrot.slane %v348, 1
    %v365 = vrot.slane %v349, 1
    %v366 = vsel %vm235, %v364, %v365
    %v367 = vsel %vm235, %v363, %v364
    %v368 = vsel %vm235, %v362, %v363
    %v369 = vsel %vm235, %v365, %v362
    %v370 = vsel %vm240, %v368, 0.0
    %v371 = vsel %vm241, %v367, 0.0
    %v372 = vsel %vm242, %v366, 0.0
    %v373 = vsel %vm243, %v369, 0.0
    %v374 = vpack.c.bf16 %v359, %v358
    %v375 = vpack.c.bf16 %v347, %v346
    %v376 = vpack.c.bf16 %v371, %v370
    %v377 = vpack.c.bf16 %v361, %v360
    %v378 = vpack.c.bf16 %v349, %v348
    %v379 = vpack.c.bf16 %v373, %v372
    %v428 = vunpack.c.l.b16 %v64
    %v429 = vunpack.c.l.b16 %v65
    %v430 = vunpack.c.l.b16 %v66
    %v431 = vunpack.c.l.b16 %v67
    %v432 = vunpack.c.l.b16 %v68
    %v433 = vunpack.c.l.b16 %v69
    %v434 = vunpack.c.l.b16 %v70
    %v435 = vunpack.c.l.b16 %v71
    %v436 = vunpack.c.l.b16 %v72
    %v437 = vunpack.c.l.b16 %v73
    %v438 = vunpack.c.l.b16 %v74
    %v439 = vunpack.c.l.b16 %v75
    %v440 = vunpack.c.l.b16 %v76
    %v441 = vunpack.c.l.b16 %v77
    %v442 = vunpack.c.l.b16 %v78
    %v443 = vunpack.c.l.b16 %v79
    %v444 = vunpack.c.l.b16 %v80
    %v445 = vunpack.c.l.b16 %v81
    %v446 = vunpack.c.l.b16 %v82
    %v447 = vunpack.c.l.b16 %v83
    %v448 = vunpack.c.l.b16 %v84
    %v449 = vunpack.c.l.b16 %v85
    %v450 = vunpack.c.l.b16 %v86
    %v451 = vunpack.c.l.b16 %v87
    %v452 = vunpack.c.l.b16 %v88
    %v453 = vunpack.c.l.b16 %v89
    %v454 = vunpack.c.l.b16 %v90
    %v455 = vunpack.c.l.b16 %v91
    %v456 = vunpack.c.l.b16 %v92
    %v457 = vunpack.c.l.b16 %v93
    %v458 = vunpack.c.l.b16 %v94
    %v459 = vunpack.c.l.b16 %v95
    %v460 = vunpack.c.l.b16 %v96
    %v461 = vunpack.c.l.b16 %v97
    %v462 = vunpack.c.l.b16 %v98
    %v463 = vunpack.c.l.b16 %v99
    %v464 = vunpack.c.l.b16 %v100
    %v465 = vunpack.c.l.b16 %v101
    %v466 = vunpack.c.l.b16 %v102
    %v467 = vunpack.c.l.b16 %v103
    %v468 = vunpack.c.l.b16 %v104
    %v469 = vunpack.c.l.b16 %v105
    %v470 = vunpack.c.l.b16 %v106
    %v471 = vunpack.c.l.b16 %v107
    %v472 = vunpack.c.l.b16 %v108
    %v473 = vunpack.c.l.b16 %v109
    %v474 = vunpack.c.l.b16 %v110
    %v475 = vunpack.c.l.b16 %v111
    %v476 = vpack.c.b16 %v429, %v428
    %v477 = vpack.c.b16 %v431, %v430
    %v478 = vpack.c.b16 %v433, %v432
    %v479 = vpack.c.b16 %v435, %v434
    %v480 = vpack.c.b16 %v437, %v436
    %v481 = vpack.c.b16 %v439, %v438
    %v482 = vpack.c.b16 %v441, %v440
    %v483 = vpack.c.b16 %v443, %v442
    %v484 = vpack.c.b16 %v445, %v444
    %v485 = vpack.c.b16 %v447, %v446
    %v486 = vpack.c.b16 %v449, %v448
    %v487 = vpack.c.b16 %v451, %v450
    %v488 = vpack.c.b16 %v453, %v452
    %v489 = vpack.c.b16 %v455, %v454
    %v490 = vpack.c.b16 %v457, %v456
    %v491 = vpack.c.b16 %v459, %v458
    %v492 = vpack.c.b16 %v461, %v460
    %v493 = vpack.c.b16 %v463, %v462
    %v494 = vpack.c.b16 %v465, %v464
    %v495 = vpack.c.b16 %v467, %v466
    %v496 = vpack.c.b16 %v469, %v468
    %v497 = vpack.c.b16 %v471, %v470
    %v498 = vpack.c.b16 %v473, %v472
    %v499 = vpack.c.b16 %v475, %v474
    %524 = vmatpush.bf16.msra.mxu0 %v483
    %525 = vmatpush.bf16.msra.mxu0 %v482
    %526 = vmatpush.bf16.msra.mxu0 %v481
    %527 = vmatpush.bf16.msra.mxu0 %v480
    %528 = vmatpush.bf16.msra.mxu0 %v479
    %529 = vmatpush.bf16.msra.mxu0 %v478
    %530 = vmatpush.bf16.msra.mxu0 %v477
    %531 = vmatpush.bf16.msra.mxu0 %v476
    %532 = vmatmul.bf16.gmra.mxu0 %v374
    %v533 = vpop.f32.mrf.mxu0
    %v534 = vadd.f32 0.0, %v533
    %v535 = vpop.f32.mrf.mxu0
    %v536 = vadd.f32 0.0, %v535
    %537 = vmatmul.bf16.gmra.mxu0 %v377
    %v538 = vpop.f32.mrf.mxu0
    %v539 = vadd.f32 0.0, %v538
    %v540 = vpop.f32.mrf.mxu0
    %v541 = vadd.f32 0.0, %v540
    %542 = vdwg.mxu0
    %543 = vmatpush.bf16.msra.mxu0 %v491
    %544 = vmatpush.bf16.msra.mxu0 %v490
    %545 = vmatpush.bf16.msra.mxu0 %v489
    %546 = vmatpush.bf16.msra.mxu0 %v488
    %547 = vmatpush.bf16.msra.mxu0 %v487
    %548 = vmatpush.bf16.msra.mxu0 %v486
    %549 = vmatpush.bf16.msra.mxu0 %v485
    %550 = vmatpush.bf16.msra.mxu0 %v484
    %551 = vmatmul.bf16.gmra.mxu0 %v375
    %v552 = vpop.f32.mrf.mxu0
    %v553 = vadd.f32 %v534, %v552
    %v554 = vpop.f32.mrf.mxu0
    %v555 = vadd.f32 %v536, %v554
    %556 = vmatmul.bf16.gmra.mxu0 %v378
    %v557 = vpop.f32.mrf.mxu0
    %v558 = vadd.f32 %v539, %v557
    %v559 = vpop.f32.mrf.mxu0
    %v560 = vadd.f32 %v541, %v559
    %561 = vdwg.mxu0
    %562 = vmatpush.bf16.msra.mxu0 %v499
    %563 = vmatpush.bf16.msra.mxu0 %v498
    %564 = vmatpush.bf16.msra.mxu0 %v497
    %565 = vmatpush.bf16.msra.mxu0 %v496
    %566 = vmatpush.bf16.msra.mxu0 %v495
    %567 = vmatpush.bf16.msra.mxu0 %v494
    %568 = vmatpush.bf16.msra.mxu0 %v493
    %569 = vmatpush.bf16.msra.mxu0 %v492
    %570 = vmatmul.bf16.gmra.mxu0 %v376
    %v571 = vpop.f32.mrf.mxu0
    %v572 = vadd.f32 %v553, %v571
    %v573 = vpop.f32.mrf.mxu0
    %v574 = vadd.f32 %v555, %v573
    %575 = vmatmul.bf16.gmra.mxu0 %v379
    %v576 = vpop.f32.mrf.mxu0
    %v577 = vadd.f32 %v558, %v576
    %v578 = vpop.f32.mrf.mxu0
    %v579 = vadd.f32 %v560, %v578
    %580 = vdwg.mxu0
    %v581 = vperm.slane %v160, 2
    %v582 = vmul.f32 %v572, %v581
    %v583 = vmul.f32 %v574, %v581
    %v584 = vmul.f32 %v577, %v581
    %v585 = vmul.f32 %v579, %v581
    %v586 = vperm.slane %v160, 3
    %v587 = vadd.f32 %v582, %v586
    %v588 = vadd.f32 %v583, %v586
    %v589 = vadd.f32 %v584, %v586
    %v590 = vadd.f32 %v585, %v586
    %v591 = vmax.f32 %v587, 0.0
    %v592 = vmax.f32 %v588, 0.0
    %v593 = vmax.f32 %v589, 0.0
    %v594 = vmax.f32 %v590, 0.0
    %v595 = vrot.slane %v591, 7
    %v596 = vrot.slane %v592, 7
    %v597 = vrot.slane %v593, 7
    %v598 = vrot.slane %v594, 7
    %v599 = vsel %vm218, %v597, %v598
    %v600 = vsel %vm218, %v596, %v597
    %v601 = vsel %vm218, %v595, %v596
    %v602 = vsel %vm218, %v598, %v595
    %v603 = vsel %vm223, %v602, 0.0
    %v604 = vsel %vm224, %v601, 0.0
    %v605 = vsel %vm225, %v600, 0.0
    %v606 = vsel %vm226, %v599, 0.0
    %v607 = vrot.slane %v591, 1
    %v608 = vrot.slane %v592, 1
    %v609 = vrot.slane %v593, 1
    %v610 = vrot.slane %v594, 1
    %v611 = vsel %vm235, %v609, %v610
    %v612 = vsel %vm235, %v608, %v609
    %v613 = vsel %vm235, %v607, %v608
    %v614 = vsel %vm235, %v610, %v607
    %v615 = vsel %vm240, %v613, 0.0
    %v616 = vsel %vm241, %v612, 0.0
    %v617 = vsel %vm242, %v611, 0.0
    %v618 = vsel %vm243, %v614, 0.0
    %v619 = vpack.c.bf16 %v604, %v603
    %v620 = vpack.c.bf16 %v592, %v591
    %v621 = vpack.c.bf16 %v616, %v615
    %v622 = vpack.c.bf16 %v606, %v605
    %v623 = vpack.c.bf16 %v594, %v593
    %v624 = vpack.c.bf16 %v618, %v617
    %v673 = vunpack.c.l.b16 %v112
    %v674 = vunpack.c.l.b16 %v113
    %v675 = vunpack.c.l.b16 %v114
    %v676 = vunpack.c.l.b16 %v115
    %v677 = vunpack.c.l.b16 %v116
    %v678 = vunpack.c.l.b16 %v117
    %v679 = vunpack.c.l.b16 %v118
    %v680 = vunpack.c.l.b16 %v119
    %v681 = vunpack.c.l.b16 %v120
    %v682 = vunpack.c.l.b16 %v121
    %v683 = vunpack.c.l.b16 %v122
    %v684 = vunpack.c.l.b16 %v123
    %v685 = vunpack.c.l.b16 %v124
    %v686 = vunpack.c.l.b16 %v125
    %v687 = vunpack.c.l.b16 %v126
    %v688 = vunpack.c.l.b16 %v127
    %v689 = vunpack.c.l.b16 %v128
    %v690 = vunpack.c.l.b16 %v129
    %v691 = vunpack.c.l.b16 %v130
    %v692 = vunpack.c.l.b16 %v131
    %v693 = vunpack.c.l.b16 %v132
    %v694 = vunpack.c.l.b16 %v133
    %v695 = vunpack.c.l.b16 %v134
    %v696 = vunpack.c.l.b16 %v135
    %v697 = vunpack.c.l.b16 %v136
    %v698 = vunpack.c.l.b16 %v137
    %v699 = vunpack.c.l.b16 %v138
    %v700 = vunpack.c.l.b16 %v139
    %v701 = vunpack.c.l.b16 %v140
    %v702 = vunpack.c.l.b16 %v141
    %v703 = vunpack.c.l.b16 %v142
    %v704 = vunpack.c.l.b16 %v143
    %v705 = vunpack.c.l.b16 %v144
    %v706 = vunpack.c.l.b16 %v145
    %v707 = vunpack.c.l.b16 %v146
    %v708 = vunpack.c.l.b16 %v147
    %v709 = vunpack.c.l.b16 %v148
    %v710 = vunpack.c.l.b16 %v149
    %v711 = vunpack.c.l.b16 %v150
    %v712 = vunpack.c.l.b16 %v151
    %v713 = vunpack.c.l.b16 %v152
    %v714 = vunpack.c.l.b16 %v153
    %v715 = vunpack.c.l.b16 %v154
    %v716 = vunpack.c.l.b16 %v155
    %v717 = vunpack.c.l.b16 %v156
    %v718 = vunpack.c.l.b16 %v157
    %v719 = vunpack.c.l.b16 %v158
    %v720 = vunpack.c.l.b16 %v159
    %v721 = vpack.c.b16 %v674, %v673
    %v722 = vpack.c.b16 %v676, %v675
    %v723 = vpack.c.b16 %v678, %v677
    %v724 = vpack.c.b16 %v680, %v679
    %v725 = vpack.c.b16 %v682, %v681
    %v726 = vpack.c.b16 %v684, %v683
    %v727 = vpack.c.b16 %v686, %v685
    %v728 = vpack.c.b16 %v688, %v687
    %v729 = vpack.c.b16 %v690, %v689
    %v730 = vpack.c.b16 %v692, %v691
    %v731 = vpack.c.b16 %v694, %v693
    %v732 = vpack.c.b16 %v696, %v695
    %v733 = vpack.c.b16 %v698, %v697
    %v734 = vpack.c.b16 %v700, %v699
    %v735 = vpack.c.b16 %v702, %v701
    %v736 = vpack.c.b16 %v704, %v703
    %v737 = vpack.c.b16 %v706, %v705
    %v738 = vpack.c.b16 %v708, %v707
    %v739 = vpack.c.b16 %v710, %v709
    %v740 = vpack.c.b16 %v712, %v711
    %v741 = vpack.c.b16 %v714, %v713
    %v742 = vpack.c.b16 %v716, %v715
    %v743 = vpack.c.b16 %v718, %v717
    %v744 = vpack.c.b16 %v720, %v719
    %769 = vmatpush.bf16.msra.mxu0 %v728
    %770 = vmatpush.bf16.msra.mxu0 %v727
    %771 = vmatpush.bf16.msra.mxu0 %v726
    %772 = vmatpush.bf16.msra.mxu0 %v725
    %773 = vmatpush.bf16.msra.mxu0 %v724
    %774 = vmatpush.bf16.msra.mxu0 %v723
    %775 = vmatpush.bf16.msra.mxu0 %v722
    %776 = vmatpush.bf16.msra.mxu0 %v721
    %777 = vmatmul.bf16.gmra.mxu0 %v619
    %v778 = vpop.f32.mrf.mxu0
    %v779 = vadd.f32 0.0, %v778
    %v780 = vpop.f32.mrf.mxu0
    %v781 = vadd.f32 0.0, %v780
    %782 = vmatmul.bf16.gmra.mxu0 %v622
    %v783 = vpop.f32.mrf.mxu0
    %v784 = vadd.f32 0.0, %v783
    %v785 = vpop.f32.mrf.mxu0
    %v786 = vadd.f32 0.0, %v785
    %787 = vdwg.mxu0
    %788 = vmatpush.bf16.msra.mxu0 %v736
    %789 = vmatpush.bf16.msra.mxu0 %v735
    %790 = vmatpush.bf16.msra.mxu0 %v734
    %791 = vmatpush.bf16.msra.mxu0 %v733
    %792 = vmatpush.bf16.msra.mxu0 %v732
    %793 = vmatpush.bf16.msra.mxu0 %v731
    %794 = vmatpush.bf16.msra.mxu0 %v730
    %795 = vmatpush.bf16.msra.mxu0 %v729
    %796 = vmatmul.bf16.gmra.mxu0 %v620
    %v797 = vpop.f32.mrf.mxu0
    %v798 = vadd.f32 %v779, %v797
    %v799 = vpop.f32.mrf.mxu0
    %v800 = vadd.f32 %v781, %v799
    %801 = vmatmul.bf16.gmra.mxu0 %v623
    %v802 = vpop.f32.mrf.mxu0
    %v803 = vadd.f32 %v784, %v802
    %v804 = vpop.f32.mrf.mxu0
    %v805 = vadd.f32 %v786, %v804
    %806 = vdwg.mxu0
    %807 = vmatpush.bf16.msra.mxu0 %v744
    %808 = vmatpush.bf16.msra.mxu0 %v743
    %809 = vmatpush.bf16.msra.mxu0 %v742
    %810 = vmatpush.bf16.msra.mxu0 %v741
    %811 = vmatpush.bf16.msra.mxu0 %v740
    %812 = vmatpush.bf16.msra.mxu0 %v739
    %813 = vmatpush.bf16.msra.mxu0 %v738
    %814 = vmatpush.bf16.msra.mxu0 %v737
    %815 = vmatmul.bf16.gmra.mxu0 %v621
    %v816 = vpop.f32.mrf.mxu0
    %v817 = vadd.f32 %v798, %v816
    %v818 = vpop.f32.mrf.mxu0
    %v819 = vadd.f32 %v800, %v818
    %820 = vmatmul.bf16.gmra.mxu0 %v624
    %v821 = vpop.f32.mrf.mxu0
    %v822 = vadd.f32 %v803, %v821
    %v823 = vpop.f32.mrf.mxu0
    %v824 = vadd.f32 %v805, %v823
    %825 = vdwg.mxu0
    %v826 = vperm.slane %v160, 4
    %v827 = vmul.f32 %v817, %v826
    %v828 = vmul.f32 %v819, %v826
    %v829 = vmul.f32 %v822, %v826
    %v830 = vmul.f32 %v824, %v826
    %v831 = vperm.slane %v160, 5
    %v832 = vadd.f32 %v827, %v831
    %v833 = vadd.f32 %v828, %v831
    %v834 = vadd.f32 %v829, %v831
    %v835 = vadd.f32 %v830, %v831
    %v836 = vadd.f32 %v832, %v346
    %v837 = vadd.f32 %v833, %v347
    %v838 = vadd.f32 %v834, %v348
    %v839 = vadd.f32 %v835, %v349
    %v840 = vmax.f32 %v836, 0.0
    %v841 = vmax.f32 %v837, 0.0
    %v842 = vmax.f32 %v838, 0.0
    %v843 = vmax.f32 %v839, 0.0
    %v844 = vadd.f32 %v840, %v841
    %v845 = vrot.slane %v844, 4
    %v846 = vadd.f32 %v844, %v845
    %v847 = vrot.slane %v846, 2
    %v848 = vadd.f32 %v846, %v847
    %v849 = vrot.slane %v848, 1
    %v850 = vadd.f32 %v848, %v849
    %v851 = vadd.f32 %v842, %v843
    %v852 = vrot.slane %v851, 4
    %v853 = vadd.f32 %v851, %v852
    %v854 = vrot.slane %v853, 2
    %v855 = vadd.f32 %v853, %v854
    %v856 = vrot.slane %v855, 1
    %v857 = vadd.f32 %v855, %v856
    %v858 = vrcp.pop 16.0
    %v859 = vmul.f32 16.0, %v858
    %v860 = vsub.f32 1.0, %v859
    %v861 = vmul.f32 %v858, %v860
    %v862 = vadd.f32 %v858, %v861
    %vm863 = vweird.f32 %v858
    %v864 = vsel %vm863, %v858, %v862
    %v865 = vmul.f32 %v850, %v864
    %v866 = vmul.f32 %v857, %v864
    %vm869 = vcmask 1041409
    %v870 = vsel %vm869, %v866, %v865
    %872 = vst [vmem:[#allocation7] sm:$0x3] %v870
    // Predicated region
    $region30: #{tpu_custom_call.1} parent=1 // pred_check
      _
    $region31: #{tpu_custom_call.1} parent=1 // pred_check_branch
      %874 = sbr.rel (0) target = $region33
    $region32: #{tpu_custom_call.1} parent=1 // pred_region
      %876 = vsyncadd [#allocation4], 0
      %s878 = sshll.u32 [#allocation7], 4
      %s879 = int_to_ptr.vmem [resolvable:$true] %s878
      %s880 = sshll.u32 %s5, 4
      %s881 = int_to_ptr.hbm [resolvable:$true] %s880
      %883 = dma.vmem_to_hbm [thread:$0]  %s879, 32, %s881, [#allocation4]
    $region33: #{tpu_custom_call.1} parent=1 // pred_fallthru
      _
    // Predicated region
    $region34: #{tpu_custom_call.1} parent=1 // pred_check
      _
    $region35: #{tpu_custom_call.1} parent=1 // pred_check_branch
      %885 = sbr.rel (0) target = $region37
    $region36: #{tpu_custom_call.1} parent=1 // pred_region
      %887 = dma.done [#allocation4], 32
    $region37: #{tpu_custom_call.1} parent=1 // pred_fallthru
      _
    %888 = vsyncpa [#allocation3], 1
    %889 = vsyncpa [#allocation6], 1
    %890 = vsyncpa [#allocation4], 1

</llo_original>
